<compile_context>
chip_gen: v7x
topology: tpu7x:2x2x1
jax: 0.10.0
libtpu: 0.0.40
codegen_flags: <defaults>
</compile_context>

<pallas_src>
import functools

import jax
import jax.numpy as jnp
from jax import lax
from jax.experimental import pallas as pl
from jax.experimental.pallas import tpu as pltpu


def _cdiv(a, b):
    return -(-a // b)


def _round_up(x, m):
    return ((x + m - 1) // m) * m


def _choose_batch_tile(B, tb):
    """Pick the batch tile.

    Constraints / goals:
      * tb is a multiple of 128 so the (1, tb) lane-dense output block and the
        (tb, Sd)/(tb, Ad) input blocks satisfy the (8, 128) block rules; the ragged
        last block (B % tb != 0) is handled by Pallas's write masking.
      * small B -> a single block whose dims equal the full array dims (always legal).
      * prefer an even number of grid steps so dimension_semantics=("parallel",)
        splits evenly across v7x's two TensorCores.
    """
    tb = max(128, _round_up(min(tb, max(B, 1)), 128))
    if B <= tb:
        if B >= 256:  # big enough to split across 2 TensorCores
            tb = _round_up(_cdiv(B, 2), 128)
            return tb, _cdiv(B, tb)
        return B, 1  # single block; all block dims == full array dims
    n = _cdiv(B, tb)
    if n % 2:
        n += 1  # best-effort even split for v7x's 2 TCs
    tb = max(128, _round_up(_cdiv(B, n), 128))
    return tb, _cdiv(B, tb)


def _termination_kernel(xs_ref, xa_ref, w1s_ref, w1a_ref, b1_ref,
                        w2t_ref, b2c_ref, w3_ref, b3_ref, out_ref):
    """One batch tile of the forward pass.

    xs_ref : (TB, Sd)  state rows (streamed)
    xa_ref : (TB, Ad)  action rows (streamed)
    w1s_ref: (Sd, H1)  fc1 weight rows for the state slice (= W1.T[:Sd])
    w1a_ref: (Ad, H1)  fc1 weight rows for the action slice
    b1_ref : (1,  H1)
    w2t_ref: (H2, H1)  fc2 weight in torch orientation (for the NT contraction)
    b2c_ref: (H2, 1)   fc2 bias as a column (broadcasts over lanes)
    w3_ref : (1,  H2)  fc3 weight as a row
    b3_ref : (1,  1)
    out_ref: (1,  TB)  lane-dense sigmoid output (batch on lanes)
    """
    # Upcast at the vreg level: free for f32 inputs, and keeps compute in f32 if
    # bf16-stored activations are streamed in on v6e/v7x (v5e-safe).
    xs = xs_ref[...].astype(jnp.float32)
    xa = xa_ref[...].astype(jnp.float32)

    # fc1 + ReLU on the *virtually* concatenated input: two MXU NN dots, no HBM
    # concat materialization.
    h1 = (jnp.dot(xs, w1s_ref[...].astype(jnp.float32),
                  preferred_element_type=jnp.float32)
          + jnp.dot(xa, w1a_ref[...].astype(jnp.float32),
                    preferred_element_type=jnp.float32))
    h1 = jnp.maximum(h1 + b1_ref[...], 0.0)                       # (TB, H1)

    # fc2 + ReLU, emitted feature-major straight out of the MXU:
    #   h2t[f, b] = sum_g w2t[f, g] * h1[b, g]   (attention-style NT contraction)
    # so the batch dim lands on lanes and bias/ReLU run on dense vregs.
    h2t = lax.dot_general(w2t_ref[...].astype(jnp.float32), h1,
                          (((1,), (1,)), ((), ())),
                          preferred_element_type=jnp.float32)      # (H2, TB)
    h2t = jnp.maximum(h2t + b2c_ref[...], 0.0)

    # fc3 + sigmoid, lane-dense: (1, H2) @ (H2, TB) -> (1, TB).  The EUP sigmoid and
    # the output store then run on dense vregs with unmasked stores.
    logits = jnp.dot(w3_ref[...].astype(jnp.float32), h2t,
                     preferred_element_type=jnp.float32) + b3_ref[...]
    out_ref[...] = jax.nn.sigmoid(logits).astype(out_ref.dtype)


def prepare_params(params, state_dim):
    """One-time conversion of torch-layout params into the kernel layout.

    params: w{i} of shape (in, out) (already W.T), b{i} of shape (out,).
    Note: on v6e/v7x these (and the streamed state/action) may be stored in bf16 to
    halve HBM traffic; the kernel upcasts to f32 internally (v5e-safe compute).
    """
    w1 = params["w1"].astype(jnp.float32)                  # (Sd+Ad, H1)
    h1 = w1.shape[1]
    h2 = params["w2"].shape[1]
    return {
        "w1_s": w1[:state_dim],                            # (Sd, H1)
        "w1_a": w1[state_dim:],                            # (Ad, H1)
        "b1": params["b1"].reshape(1, h1).astype(jnp.float32),
        "w2_t": params["w2"].T.astype(jnp.float32),        # (H2, H1) torch orientation
        "b2_col": params["b2"].reshape(h2, 1).astype(jnp.float32),
        "w3_row": params["w3"].reshape(1, h2).astype(jnp.float32),
        "b3": params["b3"].reshape(1, 1).astype(jnp.float32),
    }


@functools.partial(jax.jit, static_argnames=("tb",))
def termination_model_forward(state, action, prepared, *, tb=4096):
    """state: (B, Sd), action: (B, Ad), prepared: output of prepare_params."""
    B, Sd = state.shape
    Ad = action.shape[1]

    w1s, w1a, b1 = prepared["w1_s"], prepared["w1_a"], prepared["b1"]
    w2t, b2c = prepared["w2_t"], prepared["b2_col"]
    w3r, b3 = prepared["w3_row"], prepared["b3"]

    tb, n_tiles = _choose_batch_tile(B, tb)

    def const(arr):
        return pl.BlockSpec(arr.shape, lambda i: (0, 0))   # VMEM-resident constant

    out_dtype = state.dtype if jnp.issubdtype(state.dtype, jnp.floating) else jnp.float32

    out_row = pl.pallas_call(
        _termination_kernel,
        out_shape=jax.ShapeDtypeStruct((1, B), out_dtype),
        grid=(n_tiles,),
        in_specs=[
            pl.BlockSpec((tb, Sd), lambda i: (i, 0)),      # state rows, streamed
            pl.BlockSpec((tb, Ad), lambda i: (i, 0)),      # action rows, streamed
            const(w1s), const(w1a), const(b1),
            const(w2t), const(b2c), const(w3r), const(b3),
        ],
        out_specs=pl.BlockSpec((1, tb), lambda i: (0, i)),  # lane-dense output row
        compiler_params=pltpu.CompilerParams(
            dimension_semantics=("parallel",),              # shards across v7x's 2 TCs
            vmem_limit_bytes=32 * 1024 * 1024),
    )(state, action, w1s, w1a, b1, w2t, b2c, w3r, b3)

    # (1, B) -> (B, 1): identical contiguous element order, so this is metadata-only.
    return out_row.reshape(B, 1)


def init_params(key, state_dim, action_dim, hidden_dims):
    """PyTorch-style uniform(-1/sqrt(fan_in), 1/sqrt(fan_in)) init.

    Weights stored already transposed: w has shape (in, out), so x @ w == x @ W_torch.T.
    """
    dims_in = [state_dim + action_dim, hidden_dims[0], hidden_dims[1]]
    dims_out = [hidden_dims[0], hidden_dims[1], 1]
    params = {}
    for i, (din, dout) in enumerate(zip(dims_in, dims_out), start=1):
        key, kw, kb = jax.random.split(key, 3)
        bound = 1.0 / (din ** 0.5)
        params[f"w{i}"] = jax.random.uniform(
            kw, (din, dout), jnp.float32, minval=-bound, maxval=bound)
        params[f"b{i}"] = jax.random.uniform(
            kb, (dout,), jnp.float32, minval=-bound, maxval=bound)
    return params


def reference_forward(state, action, params):
    """Plain-JAX reference of the PyTorch forward."""
    x = jnp.concatenate([state, action], axis=-1)
    x = jax.nn.relu(x @ params["w1"] + params["b1"])
    x = jax.nn.relu(x @ params["w2"] + params["b2"])
    return jax.nn.sigmoid(x @ params["w3"] + params["b3"])


if __name__ == "__main__":
    state_dim = 12
    action_dim = 4
    hidden_dims = (32, 32)

    key = jax.random.PRNGKey(0)
    key, kp = jax.random.split(key)
    params = init_params(kp, state_dim, action_dim, hidden_dims)
    prepared = prepare_params(params, state_dim)   # one-time param prep

    # Case 1: tiny batch -> single full-array block (grid=(1,), no padding anywhere).
    key, ks, ka = jax.random.split(key, 3)
    state = jax.random.normal(ks, (8, state_dim), dtype=jnp.float32)
    action = jax.random.normal(ka, (8, action_dim), dtype=jnp.float32)
    out = jax.block_until_ready(termination_model_forward(state, action, prepared))
    ref = reference_forward(state, action, params)
    assert out.shape == (8, 1), out.shape
    assert jnp.allclose(out, ref, atol=1e-5, rtol=1e-5), float(jnp.max(jnp.abs(out - ref)))

    # Case 2: ragged batch, default tile -> even grid of two (1, 256) output blocks;
    # exercises the masked tail (300 % 256 != 0) with no wrapper pad.
    key, ks, ka = jax.random.split(key, 3)
    state2 = jax.random.normal(ks, (300, state_dim), dtype=jnp.float32)
    action2 = jax.random.normal(ka, (300, action_dim), dtype=jnp.float32)
    out2 = jax.block_until_ready(termination_model_forward(state2, action2, prepared))
    ref2 = reference_forward(state2, action2, params)
    assert out2.shape == (300, 1), out2.shape
    assert jnp.allclose(out2, ref2, atol=1e-5, rtol=1e-5), float(jnp.max(jnp.abs(out2 - ref2)))

    # Case 3: explicit small tile -> multi-step ragged grid (tb=128, grid=(3,)).
    out3 = jax.block_until_ready(
        termination_model_forward(state2, action2, prepared, tb=128))
    assert out3.shape == (300, 1), out3.shape
    assert jnp.allclose(out3, ref2, atol=1e-5, rtol=1e-5), float(jnp.max(jnp.abs(out3 - ref2)))

    print("KERNEL_OK")
</pallas_src>

<mosaic_0001>
module attributes {stable_mosaic.version = 11 : i64} {
  func.func @_termination_kernel(%arg0: i32, %arg1: memref<8x12xf32, #tpu.memory_space<vmem>>, %arg2: memref<8x4xf32, #tpu.memory_space<vmem>>, %arg3: memref<12x32xf32, #tpu.memory_space<vmem>>, %arg4: memref<4x32xf32, #tpu.memory_space<vmem>>, %arg5: memref<1x32xf32, #tpu.memory_space<vmem>>, %arg6: memref<32x32xf32, #tpu.memory_space<vmem>>, %arg7: memref<32x1xf32, #tpu.memory_space<vmem>>, %arg8: memref<1x32xf32, #tpu.memory_space<vmem>>, %arg9: memref<1x1xf32, #tpu.memory_space<vmem>>, %arg10: memref<1x8xf32, #tpu.memory_space<vmem>>) attributes {dimension_semantics = [#tpu.dimension_semantics<parallel>], iteration_bounds = array<i64: 1>, scalar_prefetch = 0 : i64, scratch_operands = 0 : i64, tpu.core_type = #tpu.core_type<tc>, window_params = [{transform_indices = @transform_0, window_bounds = array<i64: 8, 12>}, {transform_indices = @transform_1, window_bounds = array<i64: 8, 4>}, {pipeline_mode = #tpu.pipeline_mode<synchronous>, transform_indices = @transform_2, window_bounds = array<i64: 12, 32>}, {pipeline_mode = #tpu.pipeline_mode<synchronous>, transform_indices = @transform_3, window_bounds = array<i64: 4, 32>}, {pipeline_mode = #tpu.pipeline_mode<synchronous>, transform_indices = @transform_4, window_bounds = array<i64: 1, 32>}, {pipeline_mode = #tpu.pipeline_mode<synchronous>, transform_indices = @transform_5, window_bounds = array<i64: 32, 32>}, {pipeline_mode = #tpu.pipeline_mode<synchronous>, transform_indices = @transform_6, window_bounds = array<i64: 32, 1>}, {pipeline_mode = #tpu.pipeline_mode<synchronous>, transform_indices = @transform_7, window_bounds = array<i64: 1, 32>}, {pipeline_mode = #tpu.pipeline_mode<synchronous>, transform_indices = @transform_8, window_bounds = array<i64: 1, 1>}, {transform_indices = @transform_9, window_bounds = array<i64: 1, 8>}]} {
    %c0 = arith.constant 0 : index
    %c0_0 = arith.constant 0 : index
    %0 = vector.load %arg1[%c0, %c0_0] : memref<8x12xf32, #tpu.memory_space<vmem>>, vector<8x12xf32>
    %c0_1 = arith.constant 0 : index
    %c0_2 = arith.constant 0 : index
    %1 = vector.load %arg2[%c0_1, %c0_2] : memref<8x4xf32, #tpu.memory_space<vmem>>, vector<8x4xf32>
    %c0_3 = arith.constant 0 : index
    %c0_4 = arith.constant 0 : index
    %2 = vector.load %arg3[%c0_3, %c0_4] : memref<12x32xf32, #tpu.memory_space<vmem>>, vector<12x32xf32>
    %cst = arith.constant dense<0.000000e+00> : vector<8x32xf32>
    %3 = tpu.matmul %0, %2, %cst {dimension_numbers = #tpu.dot_dimension_numbers<[1], [0], [0], [1], [0, 0, 1, 1], [], []>} : vector<8x12xf32>, vector<12x32xf32>, vector<8x32xf32> -> vector<8x32xf32>
    %c0_5 = arith.constant 0 : index
    %c0_6 = arith.constant 0 : index
    %4 = vector.load %arg4[%c0_5, %c0_6] : memref<4x32xf32, #tpu.memory_space<vmem>>, vector<4x32xf32>
    %cst_7 = arith.constant dense<0.000000e+00> : vector<8x32xf32>
    %5 = tpu.matmul %1, %4, %cst_7 {dimension_numbers = #tpu.dot_dimension_numbers<[1], [0], [0], [1], [0, 0, 1, 1], [], []>} : vector<8x4xf32>, vector<4x32xf32>, vector<8x32xf32> -> vector<8x32xf32>
    %6 = arith.addf %3, %5 : vector<8x32xf32>
    %c0_8 = arith.constant 0 : index
    %c0_9 = arith.constant 0 : index
    %7 = vector.load %arg5[%c0_8, %c0_9] : memref<1x32xf32, #tpu.memory_space<vmem>>, vector<1x32xf32>
    %8 = vector.broadcast %7 : vector<1x32xf32> to vector<8x32xf32>
    %9 = arith.addf %6, %8 : vector<8x32xf32>
    %cst_10 = arith.constant 0.000000e+00 : f32
    %10 = vector.broadcast %cst_10 : f32 to vector<8x32xf32>
    %11 = arith.maximumf %9, %10 : vector<8x32xf32>
    %c0_11 = arith.constant 0 : index
    %c0_12 = arith.constant 0 : index
    %12 = vector.load %arg6[%c0_11, %c0_12] : memref<32x32xf32, #tpu.memory_space<vmem>>, vector<32x32xf32>
    %cst_13 = arith.constant dense<0.000000e+00> : vector<32x8xf32>
    %13 = tpu.matmul %12, %11, %cst_13 {dimension_numbers = #tpu.dot_dimension_numbers<[1], [1], [0], [0], [0, 0, 1, 0], [], []>} : vector<32x32xf32>, vector<8x32xf32>, vector<32x8xf32> -> vector<32x8xf32>
    %c0_14 = arith.constant 0 : index
    %c0_15 = arith.constant 0 : index
    %14 = vector.load %arg7[%c0_14, %c0_15] : memref<32x1xf32, #tpu.memory_space<vmem>>, vector<32x1xf32>
    %15 = vector.broadcast %14 : vector<32x1xf32> to vector<32x8xf32>
    %16 = arith.addf %13, %15 : vector<32x8xf32>
    %cst_16 = arith.constant 0.000000e+00 : f32
    %17 = vector.broadcast %cst_16 : f32 to vector<32x8xf32>
    %18 = arith.maximumf %16, %17 : vector<32x8xf32>
    %c0_17 = arith.constant 0 : index
    %c0_18 = arith.constant 0 : index
    %19 = vector.load %arg8[%c0_17, %c0_18] : memref<1x32xf32, #tpu.memory_space<vmem>>, vector<1x32xf32>
    %cst_19 = arith.constant dense<0.000000e+00> : vector<1x8xf32>
    %20 = tpu.matmul %19, %18, %cst_19 {dimension_numbers = #tpu.dot_dimension_numbers<[1], [0], [0], [1], [0, 0, 1, 1], [], []>} : vector<1x32xf32>, vector<32x8xf32>, vector<1x8xf32> -> vector<1x8xf32>
    %c0_20 = arith.constant 0 : index
    %c0_21 = arith.constant 0 : index
    %21 = vector.load %arg9[%c0_20, %c0_21] : memref<1x1xf32, #tpu.memory_space<vmem>>, vector<1x1xf32>
    %22 = vector.broadcast %21 : vector<1x1xf32> to vector<1x8xf32>
    %23 = arith.addf %20, %22 : vector<1x8xf32>
    %24 = arith.negf %23 : vector<1x8xf32>
    %25 = math.exp %24 : vector<1x8xf32>
    %cst_22 = arith.constant 1.000000e+00 : f32
    %26 = vector.broadcast %cst_22 : f32 to vector<1x8xf32>
    %27 = arith.addf %26, %25 : vector<1x8xf32>
    %28 = arith.divf %26, %27 : vector<1x8xf32>
    %c0_23 = arith.constant 0 : index
    %c0_24 = arith.constant 0 : index
    %29 = vector.load %arg10[%c0_23, %c0_24] : memref<1x8xf32, #tpu.memory_space<vmem>>, vector<1x8xf32>
    tpu.vector_store %arg10[%c0_23, %c0_24], %28 {strides = array<i32>} : memref<1x8xf32, #tpu.memory_space<vmem>>, vector<1x8xf32>,
    return
  }
  func.func @transform_0(%arg0: i32) -> (i32, i32) {
    %c0_i32 = arith.constant 0 : i32
    %c0_i32_0 = arith.constant 0 : i32
    return %arg0, %c0_i32 : i32, i32
  }
  func.func @transform_1(%arg0: i32) -> (i32, i32) {
    %c0_i32 = arith.constant 0 : i32
    %c0_i32_0 = arith.constant 0 : i32
    return %arg0, %c0_i32 : i32, i32
  }
  func.func @transform_2(%arg0: i32) -> (i32, i32) {
    %c0_i32 = arith.constant 0 : i32
    %c0_i32_0 = arith.constant 0 : i32
    %c0_i32_1 = arith.constant 0 : i32
    return %c0_i32, %c0_i32_0 : i32, i32
  }
  func.func @transform_3(%arg0: i32) -> (i32, i32) {
    %c0_i32 = arith.constant 0 : i32
    %c0_i32_0 = arith.constant 0 : i32
    %c0_i32_1 = arith.constant 0 : i32
    return %c0_i32, %c0_i32_0 : i32, i32
  }
  func.func @transform_4(%arg0: i32) -> (i32, i32) {
    %c0_i32 = arith.constant 0 : i32
    %c0_i32_0 = arith.constant 0 : i32
    %c0_i32_1 = arith.constant 0 : i32
    return %c0_i32, %c0_i32_0 : i32, i32
  }
  func.func @transform_5(%arg0: i32) -> (i32, i32) {
    %c0_i32 = arith.constant 0 : i32
    %c0_i32_0 = arith.constant 0 : i32
    %c0_i32_1 = arith.constant 0 : i32
    return %c0_i32, %c0_i32_0 : i32, i32
  }
  func.func @transform_6(%arg0: i32) -> (i32, i32) {
    %c0_i32 = arith.constant 0 : i32
    %c0_i32_0 = arith.constant 0 : i32
    %c0_i32_1 = arith.constant 0 : i32
    return %c0_i32, %c0_i32_0 : i32, i32
  }
  func.func @transform_7(%arg0: i32) -> (i32, i32) {
    %c0_i32 = arith.constant 0 : i32
    %c0_i32_0 = arith.constant 0 : i32
    %c0_i32_1 = arith.constant 0 : i32
    return %c0_i32, %c0_i32_0 : i32, i32
  }
  func.func @transform_8(%arg0: i32) -> (i32, i32) {
    %c0_i32 = arith.constant 0 : i32
    %c0_i32_0 = arith.constant 0 : i32
    %c0_i32_1 = arith.constant 0 : i32
    return %c0_i32, %c0_i32_0 : i32, i32
  }
  func.func @transform_9(%arg0: i32) -> (i32, i32) {
    %c0_i32 = arith.constant 0 : i32
    %c0_i32_0 = arith.constant 0 : i32
    return %c0_i32, %arg0 : i32, i32
  }
}

</mosaic_0001>

<llo_original>
// kernel: termination_model_forward.1
$region0: #{termination_model_forward.1}
  #allocation0 [shape = 'u32[]', space=smem, size = 0x4, offset = 0x4, fixed_abs, tag = 'smem constant byte address 0x4 - core index']
  #allocation1 [shape = 'u32[144,128]{1,0:T(1,128)}', space=vmem, size = 0x12000, scoped, tag = 'internal scratch']
  #allocation2 [shape = 'f32[1,1]{1,0:T(1,128)S(1)}', space=vmem, size = 0x200, scoped, tag = 'scoped memory for termination_model_forward.1']
  %s0 = inlined_call_operand.vmem [shape: f32[8,12], index: 0, kind: input, shape index: {}]
  %s1 = inlined_call_operand.vmem [shape: f32[8,4], index: 1, kind: input, shape index: {}]
  %s2 = inlined_call_operand.vmem [shape: f32[12,32], index: 2, kind: input, shape index: {}]
  %s3 = inlined_call_operand.vmem [shape: f32[4,32], index: 3, kind: input, shape index: {}]
  %s4 = inlined_call_operand.vmem [shape: f32[1,32], index: 4, kind: input, shape index: {}]
  %s5 = inlined_call_operand.vmem [shape: f32[32,32], index: 5, kind: input, shape index: {}]
  %s6 = inlined_call_operand.vmem [shape: f32[32,1], index: 6, kind: input, shape index: {}]
  %s7 = inlined_call_operand.vmem [shape: f32[1,32], index: 7, kind: input, shape index: {}]
  %s8 = inlined_call_operand.<no memory space> [shape: f32[1,1], index: 8, kind: input, shape index: {}]
  %s9 = inlined_call_operand.hbm [shape: f32[1,8], index: 9, kind: output, shape index: {}]
  %s10 = sld [smem:[#allocation0]]
  $region46: #{termination_model_forward.1} parent=0
    _
  %s12 = ssub.s32 1, %s10
  %s13 = scalar_select 0, %s12, %s10
  %v14 = vstv %s8
  %15 = vst [vmem:[#allocation2] sm:$0x1] %v14
  $region1: #{termination_model_forward.1} parent=0
    #allocation3 [shape = 'u8[512]{0}', space=vmem, size = 0x400, scoped, tag = 'output window, operand 0, single buffered']
    #allocation4 [shape = 's32[1]{0}', space=sflag, size = 0x4, scoped, tag = 'scoped memory for termination_model_forward.1']
    %16 = vsyncpa [#allocation4], 0
    // Predicated region
    $region2: #{termination_model_forward.1} parent=1 // pred_check
      _
    $region3: #{termination_model_forward.1} parent=1 // pred_check_branch
      %18 = sbr.rel (0) target = $region5
    $region4: #{termination_model_forward.1} parent=1 // pred_region
      _
    $region5: #{termination_model_forward.1} parent=1 // pred_fallthru
      _
    // Predicated region
    $region6: #{termination_model_forward.1} parent=1 // pred_check
      _
    $region7: #{termination_model_forward.1} parent=1 // pred_check_branch
      %20 = sbr.rel (0) target = $region9
    $region8: #{termination_model_forward.1} parent=1 // pred_region
      _
    $region9: #{termination_model_forward.1} parent=1 // pred_fallthru
      _
    // Predicated region
    $region10: #{termination_model_forward.1} parent=1 // pred_check
      _
    $region11: #{termination_model_forward.1} parent=1 // pred_check_branch
      %22 = sbr.rel (0) target = $region13
    $region12: #{termination_model_forward.1} parent=1 // pred_region
      _
    $region13: #{termination_model_forward.1} parent=1 // pred_fallthru
      _
    // Predicated region
    $region14: #{termination_model_forward.1} parent=1 // pred_check
      _
    $region15: #{termination_model_forward.1} parent=1 // pred_check_branch
      %24 = sbr.rel (0) target = $region17
    $region16: #{termination_model_forward.1} parent=1 // pred_region
      _
    $region17: #{termination_model_forward.1} parent=1 // pred_fallthru
      _
    // Predicated region
    $region18: #{termination_model_forward.1} parent=1 // pred_check
      _
    $region19: #{termination_model_forward.1} parent=1 // pred_check_branch
      %26 = sbr.rel (0) target = $region21
    $region20: #{termination_model_forward.1} parent=1 // pred_region
      _
    $region21: #{termination_model_forward.1} parent=1 // pred_fallthru
      _
    // Predicated region
    $region22: #{termination_model_forward.1} parent=1 // pred_check
      _
    $region23: #{termination_model_forward.1} parent=1 // pred_check_branch
      %28 = sbr.rel (0) target = $region25
    $region24: #{termination_model_forward.1} parent=1 // pred_region
      _
    $region25: #{termination_model_forward.1} parent=1 // pred_fallthru
      _
    // Predicated region
    $region26: #{termination_model_forward.1} parent=1 // pred_check
      _
    $region27: #{termination_model_forward.1} parent=1 // pred_check_branch
      %30 = sbr.rel (0) target = $region29
    $region28: #{termination_model_forward.1} parent=1 // pred_region
      _
    $region29: #{termination_model_forward.1} parent=1 // pred_fallthru
      _
    // Predicated region
    $region30: #{termination_model_forward.1} parent=1 // pred_check
      _
    $region31: #{termination_model_forward.1} parent=1 // pred_check_branch
      %32 = sbr.rel (0) target = $region33
    $region32: #{termination_model_forward.1} parent=1 // pred_region
      _
    $region33: #{termination_model_forward.1} parent=1 // pred_fallthru
      _
    // Predicated region
    $region34: #{termination_model_forward.1} parent=1 // pred_check
      _
    $region35: #{termination_model_forward.1} parent=1 // pred_check_branch
      %34 = sbr.rel (0) target = $region37
    $region36: #{termination_model_forward.1} parent=1 // pred_region
      _
    $region37: #{termination_model_forward.1} parent=1 // pred_fallthru
      _
    %v35 = vld [vmem:[%s0] sm:$0xff]
    %v36 = vld [vmem:[%s1] sm:$0xff]
    %v37 = vld [vmem:[%s2] sm:$0xff]
    %v38 = vld [vmem:[%s2 + $0x8] sm:$0xf]
    %v39 = vld [vmem:[%s3] sm:$0xf]
    %vm40 = vcmask 31744
    %v42 = vsel %vm40, %v36, 0
    %vm44 = vcmask 1043456
    %v46 = vsel %vm44, %v39, 0
    %48 = vmatprep.subr.mxu0 0.0
    %49 = vmatpush1.msra.mxu0 %v46
    %50 = vmatprep.subr.mxu0 0.0
    %51 = vmatpush1.msra.mxu0 0.0
    %52 = vmatprep.subr.mxu0 0.0
    %53 = vmatpush1.msra.mxu0 0.0
    %54 = vmatprep.subr.mxu0 0.0
    %55 = vmatpush1.msra.mxu0 0.0
    %56 = vmatprep.subr.mxu0 0.0
    %57 = vmatpush1.msra.mxu0 0.0
    %58 = vmatprep.subr.mxu0 0.0
    %59 = vmatpush1.msra.mxu0 0.0
    %60 = vmatprep.subr.mxu0 0.0
    %61 = vmatpush1.msra.mxu0 0.0
    %62 = vmatprep.subr.mxu0 0.0
    %63 = vmatpush1.msra.mxu0 0.0
    %64 = vmatprep.subr.mxu0 0.0
    %65 = vmatpush1.msra.mxu0 0.0
    %66 = vmatprep.subr.mxu0 0.0
    %67 = vmatpush1.msra.mxu0 0.0
    %68 = vmatprep.subr.mxu0 0.0
    %69 = vmatpush1.msra.mxu0 0.0
    %70 = vmatprep.subr.mxu0 0.0
    %71 = vmatpush1.msra.mxu0 0.0
    %72 = vmatprep.subr.mxu0 0.0
    %73 = vmatpush1.msra.mxu0 0.0
    %74 = vmatprep.subr.mxu0 0.0
    %75 = vmatpush1.msra.mxu0 0.0
    %76 = vmatprep.subr.mxu0 0.0
    %77 = vmatpush1.msra.mxu0 0.0
    %78 = vmatprep.subr.mxu0 0.0
    %79 = vmatpush1.msra.mxu0 0.0
    %80 = vmatprep.subr.mxu0 0.0
    %81 = vmatpush1.msra.mxu0 0.0
    %82 = vmatprep.subr.mxu0 0.0
    %83 = vmatpush1.msra.mxu0 0.0
    %84 = vmatprep.subr.mxu0 0.0
    %85 = vmatpush1.msra.mxu0 0.0
    %86 = vmatprep.subr.mxu0 0.0
    %87 = vmatpush1.msra.mxu0 0.0
    %88 = vmatprep.subr.mxu0 0.0
    %89 = vmatpush1.msra.mxu0 0.0
    %90 = vmatprep.subr.mxu0 0.0
    %91 = vmatpush1.msra.mxu0 0.0
    %92 = vmatprep.subr.mxu0 0.0
    %93 = vmatpush1.msra.mxu0 0.0
    %94 = vmatprep.subr.mxu0 0.0
    %95 = vmatpush1.msra.mxu0 0.0
    %96 = vmatprep.subr.mxu0 0.0
    %97 = vmatpush1.msra.mxu0 0.0
    %98 = vmatprep.subr.mxu0 0.0
    %99 = vmatpush1.msra.mxu0 0.0
    %100 = vmatprep.subr.mxu0 0.0
    %101 = vmatpush1.msra.mxu0 0.0
    %102 = vmatprep.subr.mxu0 0.0
    %103 = vmatpush1.msra.mxu0 0.0
    %104 = vmatprep.subr.mxu0 0.0
    %105 = vmatpush1.msra.mxu0 0.0
    %106 = vmatprep.subr.mxu0 0.0
    %107 = vmatpush1.msra.mxu0 0.0
    %108 = vmatprep.subr.mxu0 0.0
    %109 = vmatpush1.msra.mxu0 0.0
    %110 = vmatprep.subr.mxu0 0.0
    %111 = vmatpush1.msra.mxu0 0.0
    %112 = vmatprep.mubr.f32.mxu0 0.0
    %113 = vmatmul.mubr.f32.gmra.mrb[0].mxu0 %v42
    %v114 = vpop.f32.mrb[0].mxu0
    %v115 = vadd.f32 0.0, %v114
    %v116 = vpop.f32.mrb[0].mxu0
    %117 = vdwg.mxu0
    %vm118 = vcmask 97280
    %v120 = vsel %vm118, %v35, 0
    %v123 = vsel %vm44, %v38, 0
    %125 = vmatprep.subr.mxu0 0.0
    %126 = vmatpush1.msra.mxu0 %v37
    %127 = vmatprep.subr.mxu0 0.0
    %128 = vmatpush1.msra.mxu0 %v123
    %129 = vmatprep.subr.mxu0 0.0
    %130 = vmatpush1.msra.mxu0 0.0
    %131 = vmatprep.subr.mxu0 0.0
    %132 = vmatpush1.msra.mxu0 0.0
    %133 = vmatprep.subr.mxu0 0.0
    %134 = vmatpush1.msra.mxu0 0.0
    %135 = vmatprep.subr.mxu0 0.0
    %136 = vmatpush1.msra.mxu0 0.0
    %137 = vmatprep.subr.mxu0 0.0
    %138 = vmatpush1.msra.mxu0 0.0
    %139 = vmatprep.subr.mxu0 0.0
    %140 = vmatpush1.msra.mxu0 0.0
    %141 = vmatprep.subr.mxu0 0.0
    %142 = vmatpush1.msra.mxu0 0.0
    %143 = vmatprep.subr.mxu0 0.0
    %144 = vmatpush1.msra.mxu0 0.0
    %145 = vmatprep.subr.mxu0 0.0
    %146 = vmatpush1.msra.mxu0 0.0
    %147 = vmatprep.subr.mxu0 0.0
    %148 = vmatpush1.msra.mxu0 0.0
    %149 = vmatprep.subr.mxu0 0.0
    %150 = vmatpush1.msra.mxu0 0.0
    %151 = vmatprep.subr.mxu0 0.0
    %152 = vmatpush1.msra.mxu0 0.0
    %153 = vmatprep.subr.mxu0 0.0
    %154 = vmatpush1.msra.mxu0 0.0
    %155 = vmatprep.subr.mxu0 0.0
    %156 = vmatpush1.msra.mxu0 0.0
    %157 = vmatprep.subr.mxu0 0.0
    %158 = vmatpush1.msra.mxu0 0.0
    %159 = vmatprep.subr.mxu0 0.0
    %160 = vmatpush1.msra.mxu0 0.0
    %161 = vmatprep.subr.mxu0 0.0
    %162 = vmatpush1.msra.mxu0 0.0
    %163 = vmatprep.subr.mxu0 0.0
    %164 = vmatpush1.msra.mxu0 0.0
    %165 = vmatprep.subr.mxu0 0.0
    %166 = vmatpush1.msra.mxu0 0.0
    %167 = vmatprep.subr.mxu0 0.0
    %168 = vmatpush1.msra.mxu0 0.0
    %169 = vmatprep.subr.mxu0 0.0
    %170 = vmatpush1.msra.mxu0 0.0
    %171 = vmatprep.subr.mxu0 0.0
    %172 = vmatpush1.msra.mxu0 0.0
    %173 = vmatprep.subr.mxu0 0.0
    %174 = vmatpush1.msra.mxu0 0.0
    %175 = vmatprep.subr.mxu0 0.0
    %176 = vmatpush1.msra.mxu0 0.0
    %177 = vmatprep.subr.mxu0 0.0
    %178 = vmatpush1.msra.mxu0 0.0
    %179 = vmatprep.subr.mxu0 0.0
    %180 = vmatpush1.msra.mxu0 0.0
    %181 = vmatprep.subr.mxu0 0.0
    %182 = vmatpush1.msra.mxu0 0.0
    %183 = vmatprep.subr.mxu0 0.0
    %184 = vmatpush1.msra.mxu0 0.0
    %185 = vmatprep.subr.mxu0 0.0
    %186 = vmatpush1.msra.mxu0 0.0
    %187 = vmatprep.subr.mxu0 0.0
    %188 = vmatpush1.msra.mxu0 0.0
    %189 = vmatprep.mubr.f32.mxu0 0.0
    %190 = vmatmul.mubr.f32.gmra.mrb[0].mxu0 %v120
    %v191 = vpop.f32.mrb[0].mxu0
    %v192 = vadd.f32 %v115, %v191
    %v193 = vpop.f32.mrb[0].mxu0
    %194 = vdwg.mxu0
    %v195 = vld [vmem:[%s4] sm:$0x1]
    %v197 = vlaneseq
    %v198 = vshrl.u32 %v197, 7
    %v199 = vsub.s32 0, %v198
    %v200 = vrot.slane %v195, %v199
    %v202 = vadd.f32 %v192, %v200
    %v203 = vmax.f32 %v202, 0.0
    %v204 = vld [vmem:[%s5] sm:$0xff]
    %v205 = vld [vmem:[%s5 + $0x8] sm:$0xff]
    %v206 = vld [vmem:[%s5 + $0x10] sm:$0xff]
    %v207 = vld [vmem:[%s5 + $0x18] sm:$0xff]
    %v208 = vld [vmem:[%s6] sm:$0xff]
    %v209 = vld [vmem:[%s6 + $0x8] sm:$0xff]
    %v210 = vld [vmem:[%s6 + $0x10] sm:$0xff]
    %v211 = vld [vmem:[%s6 + $0x18] sm:$0xff]
    %213 = vset.pattern.permute.xlu0 0
    %214 = vperm.xlu0 %213, %v208
    %v215 = vpop.permute.xlu0 %214
    %218 = vset.pattern.permute.xlu0 0
    %219 = vperm.xlu0 %218, %v209
    %v220 = vpop.permute.xlu0 %219
    %223 = vset.pattern.permute.xlu0 0
    %224 = vperm.xlu0 %223, %v210
    %v225 = vpop.permute.xlu0 %224
    %228 = vset.pattern.permute.xlu0 0
    %229 = vperm.xlu0 %228, %v211
    %v230 = vpop.permute.xlu0 %229
    %vm232 = vcmask 261120
    %v234 = vsel %vm232, %v204, 0
    %v237 = vsel %vm232, %v205, 0
    %v240 = vsel %vm232, %v206, 0
    %v243 = vsel %vm232, %v207, 0
    %v246 = vsel %vm232, %v203, 0
    %248 = vmatprep.subr.mxu0 0.0
    %249 = vmatpush1.xpose.msra.mxu0 %v246
    %250 = vmatprep.subr.mxu0 0.0
    %251 = vmatpush1.xpose.msra.mxu0 0.0
    %252 = vmatprep.subr.mxu0 0.0
    %253 = vmatpush1.xpose.msra.mxu0 0.0
    %254 = vmatprep.subr.mxu0 0.0
    %255 = vmatpush1.xpose.msra.mxu0 0.0
    %256 = vmatprep.subr.mxu0 0.0
    %257 = vmatpush1.xpose.msra.mxu0 0.0
    %258 = vmatprep.subr.mxu0 0.0
    %259 = vmatpush1.xpose.msra.mxu0 0.0
    %260 = vmatprep.subr.mxu0 0.0
    %261 = vmatpush1.xpose.msra.mxu0 0.0
    %262 = vmatprep.subr.mxu0 0.0
    %263 = vmatpush1.xpose.msra.mxu0 0.0
    %264 = vmatprep.subr.mxu0 0.0
    %265 = vmatpush1.xpose.msra.mxu0 0.0
    %266 = vmatprep.subr.mxu0 0.0
    %267 = vmatpush1.xpose.msra.mxu0 0.0
    %268 = vmatprep.subr.mxu0 0.0
    %269 = vmatpush1.xpose.msra.mxu0 0.0
    %270 = vmatprep.subr.mxu0 0.0
    %271 = vmatpush1.xpose.msra.mxu0 0.0
    %272 = vmatprep.subr.mxu0 0.0
    %273 = vmatpush1.xpose.msra.mxu0 0.0
    %274 = vmatprep.subr.mxu0 0.0
    %275 = vmatpush1.xpose.msra.mxu0 0.0
    %276 = vmatprep.subr.mxu0 0.0
    %277 = vmatpush1.xpose.msra.mxu0 0.0
    %278 = vmatprep.subr.mxu0 0.0
    %279 = vmatpush1.xpose.msra.mxu0 0.0
    %280 = vmatprep.subr.mxu0 0.0
    %281 = vmatpush1.xpose.msra.mxu0 0.0
    %282 = vmatprep.subr.mxu0 0.0
    %283 = vmatpush1.xpose.msra.mxu0 0.0
    %284 = vmatprep.subr.mxu0 0.0
    %285 = vmatpush1.xpose.msra.mxu0 0.0
    %286 = vmatprep.subr.mxu0 0.0
    %287 = vmatpush1.xpose.msra.mxu0 0.0
    %288 = vmatprep.subr.mxu0 0.0
    %289 = vmatpush1.xpose.msra.mxu0 0.0
    %290 = vmatprep.subr.mxu0 0.0
    %291 = vmatpush1.xpose.msra.mxu0 0.0
    %292 = vmatprep.subr.mxu0 0.0
    %293 = vmatpush1.xpose.msra.mxu0 0.0
    %294 = vmatprep.subr.mxu0 0.0
    %295 = vmatpush1.xpose.msra.mxu0 0.0
    %296 = vmatprep.subr.mxu0 0.0
    %297 = vmatpush1.xpose.msra.mxu0 0.0
    %298 = vmatprep.subr.mxu0 0.0
    %299 = vmatpush1.xpose.msra.mxu0 0.0
    %300 = vmatprep.subr.mxu0 0.0
    %301 = vmatpush1.xpose.msra.mxu0 0.0
    %302 = vmatprep.subr.mxu0 0.0
    %303 = vmatpush1.xpose.msra.mxu0 0.0
    %304 = vmatprep.subr.mxu0 0.0
    %305 = vmatpush1.xpose.msra.mxu0 0.0
    %306 = vmatprep.subr.mxu0 0.0
    %307 = vmatpush1.xpose.msra.mxu0 0.0
    %308 = vmatprep.subr.mxu0 0.0
    %309 = vmatpush1.xpose.msra.mxu0 0.0
    %310 = vmatprep.subr.mxu0 0.0
    %311 = vmatpush1.xpose.msra.mxu0 0.0
    %312 = vmatprep.mubr.f32.mxu0 0.0
    %313 = vmatmul.mubr.f32.gmra.mrb[0].mxu0 %v234
    %v314 = vpop.f32.mrb[0].mxu0
    %v315 = vadd.f32 %v215, %v314
    %v316 = vpop.f32.mrb[0].mxu0
    %317 = vmatprep.mubr.f32.mxu0 0.0
    %318 = vmatmul.mubr.f32.gmra.mrb[0].mxu0 %v237
    %v319 = vpop.f32.mrb[0].mxu0
    %v320 = vadd.f32 %v220, %v319
    %v321 = vpop.f32.mrb[0].mxu0
    %322 = vmatprep.mubr.f32.mxu0 0.0
    %323 = vmatmul.mubr.f32.gmra.mrb[0].mxu0 %v240
    %v324 = vpop.f32.mrb[0].mxu0
    %v325 = vadd.f32 %v225, %v324
    %v326 = vpop.f32.mrb[0].mxu0
    %327 = vmatprep.mubr.f32.mxu0 0.0
    %328 = vmatmul.mubr.f32.gmra.mrb[0].mxu0 %v243
    %v329 = vpop.f32.mrb[0].mxu0
    %v330 = vadd.f32 %v230, %v329
    %v331 = vpop.f32.mrb[0].mxu0
    %332 = vdwg.mxu0
    %v333 = vmax.f32 %v315, 0.0
    %v334 = vmax.f32 %v320, 0.0
    %v335 = vmax.f32 %v325, 0.0
    %v336 = vmax.f32 %v330, 0.0
    %v337 = vld [vmem:[%s7] sm:$0x1]
    %v338 = vld [vmem:[#allocation2] sm:$0x1]
    %340 = vset.pattern.permute.xlu0 0
    %341 = vperm.xlu0 %340, %v338
    %v342 = vpop.permute.xlu0 %341
    %v344 = vlaneseq
    %v345 = vshrl.u32 %v344, 7
    %v346 = vsub.s32 0, %v345
    %v347 = vrot.slane %v342, %v346
    %v349 = vsel %vm232, %v337, 0
    %351 = vmatprep.subr.mxu0 0.0
    %352 = vmatpush1.msra.mxu0 %v333
    %353 = vmatprep.subr.mxu0 0.0
    %354 = vmatpush1.msra.mxu0 %v334
    %355 = vmatprep.subr.mxu0 0.0
    %356 = vmatpush1.msra.mxu0 %v335
    %357 = vmatprep.subr.mxu0 0.0
    %358 = vmatpush1.msra.mxu0 %v336
    %359 = vmatprep.subr.mxu0 0.0
    %360 = vmatpush1.msra.mxu0 0.0
    %361 = vmatprep.subr.mxu0 0.0
    %362 = vmatpush1.msra.mxu0 0.0
    %363 = vmatprep.subr.mxu0 0.0
    %364 = vmatpush1.msra.mxu0 0.0
    %365 = vmatprep.subr.mxu0 0.0
    %366 = vmatpush1.msra.mxu0 0.0
    %367 = vmatprep.subr.mxu0 0.0
    %368 = vmatpush1.msra.mxu0 0.0
    %369 = vmatprep.subr.mxu0 0.0
    %370 = vmatpush1.msra.mxu0 0.0
    %371 = vmatprep.subr.mxu0 0.0
    %372 = vmatpush1.msra.mxu0 0.0
    %373 = vmatprep.subr.mxu0 0.0
    %374 = vmatpush1.msra.mxu0 0.0
    %375 = vmatprep.subr.mxu0 0.0
    %376 = vmatpush1.msra.mxu0 0.0
    %377 = vmatprep.subr.mxu0 0.0
    %378 = vmatpush1.msra.mxu0 0.0
    %379 = vmatprep.subr.mxu0 0.0
    %380 = vmatpush1.msra.mxu0 0.0
    %381 = vmatprep.subr.mxu0 0.0
    %382 = vmatpush1.msra.mxu0 0.0
    %383 = vmatprep.subr.mxu0 0.0
    %384 = vmatpush1.msra.mxu0 0.0
    %385 = vmatprep.subr.mxu0 0.0
    %386 = vmatpush1.msra.mxu0 0.0
    %387 = vmatprep.subr.mxu0 0.0
    %388 = vmatpush1.msra.mxu0 0.0
    %389 = vmatprep.subr.mxu0 0.0
    %390 = vmatpush1.msra.mxu0 0.0
    %391 = vmatprep.subr.mxu0 0.0
    %392 = vmatpush1.msra.mxu0 0.0
    %393 = vmatprep.subr.mxu0 0.0
    %394 = vmatpush1.msra.mxu0 0.0
    %395 = vmatprep.subr.mxu0 0.0
    %396 = vmatpush1.msra.mxu0 0.0
    %397 = vmatprep.subr.mxu0 0.0
    %398 = vmatpush1.msra.mxu0 0.0
    %399 = vmatprep.subr.mxu0 0.0
    %400 = vmatpush1.msra.mxu0 0.0
    %401 = vmatprep.subr.mxu0 0.0
    %402 = vmatpush1.msra.mxu0 0.0
    %403 = vmatprep.subr.mxu0 0.0
    %404 = vmatpush1.msra.mxu0 0.0
    %405 = vmatprep.subr.mxu0 0.0
    %406 = vmatpush1.msra.mxu0 0.0
    %407 = vmatprep.subr.mxu0 0.0
    %408 = vmatpush1.msra.mxu0 0.0
    %409 = vmatprep.subr.mxu0 0.0
    %410 = vmatpush1.msra.mxu0 0.0
    %411 = vmatprep.subr.mxu0 0.0
    %412 = vmatpush1.msra.mxu0 0.0
    %413 = vmatprep.subr.mxu0 0.0
    %414 = vmatpush1.msra.mxu0 0.0
    %415 = vmatprep.mubr.f32.mxu0 0.0
    %416 = vmatmul.mubr.f32.gmra.mrb[0].mxu0 %v349
    %v417 = vpop.f32.mrb[0].mxu0
    %v418 = vadd.f32 %v347, %v417
    %v419 = vpop.f32.mrb[0].mxu0
    %420 = vdwg.mxu0
    %v421 = vxor.u32 %v418, 2147483648
    %v422 = vmul.f32 %v421, 1.442695
    %v423 = vpow.pop %v422
    %v424 = vadd.f32 %v423, 1.0
    %v425 = vrcp.pop %v424
    %v426 = vmul.f32 1.0, %v425
    %vm427 = vcmask 57344
    %428 = vst.msk [vmem:[#allocation3] sm:$0x1] %vm427, %v426
    // Predicated region
    $region38: #{termination_model_forward.1} parent=1 // pred_check
      _
    $region39: #{termination_model_forward.1} parent=1 // pred_check_branch
      %430 = sbr.rel (0) target = $region41
    $region40: #{termination_model_forward.1} parent=1 // pred_region
      %s432 = ssub.s32 16, 16
      %433 = vsyncadd [#allocation4], %s432
      %s435 = sshll.u32 [#allocation3], 4
      %s436 = int_to_ptr.vmem [resolvable:$true] %s435
      %438 = dma.vmem_to_hbm [thread:$0]  %s436, 16, %s9, [#allocation4]
    $region41: #{termination_model_forward.1} parent=1 // pred_fallthru
      _
    // Predicated region
    $region42: #{termination_model_forward.1} parent=1 // pred_check
      _
    $region43: #{termination_model_forward.1} parent=1 // pred_check_branch
      %440 = sbr.rel (0) target = $region45
    $region44: #{termination_model_forward.1} parent=1 // pred_region
      %441 = dma.done [#allocation4], 16
    $region45: #{termination_model_forward.1} parent=1 // pred_fallthru
      _
    %442 = vsyncpa [#allocation4], 1

</llo_original>
